<compile_context>
chip_gen: v6e
topology: v6e:2x2x1
jax: 0.10.0
libtpu: 0.0.40
codegen_flags: <defaults>
</compile_context>

<pallas_src>
import numpy as np

import jax
import jax.numpy as jnp
from jax import lax
from jax.experimental import pallas as pl
from jax.experimental.pallas import tpu as pltpu

_LANE = 128
_SUBLANE = 8


# ------------------------------ VMEM / tiling --------------------------------

def _physical_vmem_bytes():
    """Per-core physical VMEM (v5e/v6e 128 MiB, v7x 64 MiB); safe fallback."""
    try:
        info = pltpu.get_tpu_info()
        v = getattr(info, "vmem_capacity_bytes", None)
        if v:
            return int(v)
    except Exception:
        pass
    return 64 << 20


def _vmem_budget_bytes():
    # leave headroom for Mosaic-internal scratch / semaphores / constants
    return int(max(24 << 20, _physical_vmem_bytes() - (16 << 20)))


def _attn_footprint_bytes(tq, S, hd, pbytes):
    """True per-step attention working set: 2x-buffered in/out blocks, f32
    score scratch, accumulators and per-chunk intermediates."""
    in_bufs = 2 * (tq * hd * 2) + 2 * 2 * (S * hd * 2) + 2 * (S * 4)
    out_bufs = 2 * (tq * hd * 2) + 2 * (tq * S * pbytes)
    scratch = tq * S * 4 + tq * hd * 4 + 2 * (tq * _LANE * 4)
    interm = 6 * tq * tq * 4
    return in_bufs + out_bufs + scratch + interm


def _choose_q_tile(S, hd, pbytes, budget, q_tile=None):
    if q_tile is not None:
        q_tile = int(q_tile)
        assert S % q_tile == 0, "q_tile must divide the sequence length"
        assert q_tile == S or q_tile % _LANE == 0, "q_tile must be a 128-multiple"
        return q_tile
    if S <= 256 or S % _LANE != 0:
        return S
    best = _LANE
    t = _LANE
    while t <= min(S, 1024):
        if S % t == 0 and _attn_footprint_bytes(t, S, hd, pbytes) <= budget:
            best = t
        t += _LANE
    return best


def _choose_row_tile(n_rows, k_cols, n_cols, budget):
    """Row tile for the projection matmuls over the flattened (B*S) axis."""
    if n_rows <= 512:
        return n_rows
    t = 512
    while t >= _SUBLANE:
        if n_rows % t == 0:
            need = (2 * (t * k_cols * 2) + 2 * (k_cols * n_cols * 2)
                    + 2 * (t * n_cols * 4) + t * n_cols * 4)
            if need <= budget:
                return t
        t -= _SUBLANE
    return min(n_rows, 512)


# --------------------------------- kernels -----------------------------------

def _qkv_fused_kernel(x_ref, w_ref, q_ref, k_ref, v_ref):
    # one (tm, H) @ (H, 3H) matmul; three lane-dense output stores.
    y = jnp.dot(x_ref[...], w_ref[...], preferred_element_type=jnp.float32)
    h = q_ref.shape[-1]
    q_ref[...] = y[:, :h].astype(q_ref.dtype)
    k_ref[...] = y[:, h:2 * h].astype(k_ref.dtype)
    v_ref[...] = y[:, 2 * h:].astype(v_ref.dtype)


def _qkv_split_kernel(x_ref, wq_ref, wk_ref, wv_ref, q_ref, k_ref, v_ref):
    # fallback for H not a multiple of 128 (tiny/demo shapes).
    x = x_ref[...]
    q_ref[...] = jnp.dot(x, wq_ref[...],
                         preferred_element_type=jnp.float32).astype(q_ref.dtype)
    k_ref[...] = jnp.dot(x, wk_ref[...],
                         preferred_element_type=jnp.float32).astype(k_ref.dtype)
    v_ref[...] = jnp.dot(x, wv_ref[...],
                         preferred_element_type=jnp.float32).astype(v_ref.dtype)


def _attention_kernel(q_ref, k_ref, v_ref, kmask_ref, ctx_ref, proba_ref,
                      m_buf, l_buf, acc_buf, s_buf):
    tq = q_ref.shape[-2]
    hd = q_ref.shape[-1]
    S = k_ref.shape[-2]
    nkv = S // tq                       # static chunk count (tq divides S)
    i = pl.program_id(2)                # query-tile index
    neg = jnp.finfo(jnp.float32).min

    q = q_ref[...].reshape(tq, hd)                       # (tq, hd) bf16
    km = kmask_ref[...].reshape(1, S)                    # key mask (f32)

    # per-step state init (scratch persists across grid steps)
    m_buf[...] = jnp.full((tq, 1), neg, jnp.float32)
    l_buf[...] = jnp.zeros((tq, 1), jnp.float32)
    acc_buf[...] = jnp.zeros((tq, hd), jnp.float32)
    # strictly-future kv chunks contribute exact zeros to proba
    proba_ref[...] = jnp.zeros(proba_ref.shape, proba_ref.dtype)

    def kv_chunk(ref, c):
        if len(ref.shape) == 4:
            return ref[0, 0, c * tq:(c + 1) * tq, :]
        return ref[0, c * tq:(c + 1) * tq, :]

    # ---- pass A: raw masked scores for causally-allowed chunks + row max ----
    def pass_a(c):
        k_c = kv_chunk(k_ref, c)                                        # (tq, hd)
        s = lax.dot_general(q, k_c, (((1,), (1,)), ((), ())),
                            preferred_element_type=jnp.float32)         # (tq, tq)
        rows = i * tq + lax.broadcasted_iota(jnp.int32, (tq, tq), 0)
        cols = c * tq + lax.broadcasted_iota(jnp.int32, (tq, tq), 1)
        allowed = (rows >= cols) & (km[:, c * tq:(c + 1) * tq] > 0.5)
        s = jnp.where(allowed, s, neg)
        s_buf[:, c * tq:(c + 1) * tq] = s
        m_buf[...] = jnp.maximum(m_buf[...], jnp.max(s, axis=-1, keepdims=True))

    # ---- pass B: exponentials (allowed chunks only) + row sums --------------
    def pass_b(c):
        e = jnp.exp(s_buf[:, c * tq:(c + 1) * tq] - m_buf[...])
        l_buf[...] = l_buf[...] + jnp.sum(e, axis=-1, keepdims=True)
        s_buf[:, c * tq:(c + 1) * tq] = e

    for c in range(nkv):
        if c == 0:
            pass_a(0)
        else:
            pl.when(i >= c)(lambda c=c: pass_a(c))
    for c in range(nkv):
        if c == 0:
            pass_b(0)
        else:
            pl.when(i >= c)(lambda c=c: pass_b(c))

    inv = pl.reciprocal(l_buf[...], approx=True)                        # (tq, 1)

    # ---- pass C: normalize, store proba, accumulate P @ V (allowed only) ----
    store_bf16 = np.dtype(proba_ref.dtype) == np.dtype(jnp.bfloat16)

    def pass_c(c):
        p = s_buf[:, c * tq:(c + 1) * tq] * inv
        p_bf = p.astype(jnp.bfloat16)          # single cast reused for PV + store
        if store_bf16:
            proba_ref[0, 0, :, c * tq:(c + 1) * tq] = p_bf
        else:
            proba_ref[0, 0, :, c * tq:(c + 1) * tq] = p.astype(proba_ref.dtype)
        v_c = kv_chunk(v_ref, c)                                        # (tq, hd)
        acc_buf[...] = acc_buf[...] + jnp.dot(
            p_bf, v_c, preferred_element_type=jnp.float32)

    for c in range(nkv):
        if c == 0:
            pass_c(0)
        else:
            pl.when(i >= c)(lambda c=c: pass_c(c))

    ctx_ref[...] = acc_buf[...].astype(ctx_ref.dtype).reshape(ctx_ref.shape)


def _out_proj_kernel(ctx_ref, w_ref, b_ref, out_ref):
    y = jnp.dot(ctx_ref[...], w_ref[...], preferred_element_type=jnp.float32)
    out_ref[...] = (y + b_ref[...]).astype(out_ref.dtype)


# --------------------------------- wrapper -----------------------------------

def auto_regressive_global_self_attention(hidden_states, attention_mask, params,
                                          proba_dtype=jnp.bfloat16,
                                          out_dtype=jnp.bfloat16,
                                          q_tile=None):
    B, S, H = hidden_states.shape
    nh = int(params["num_heads"])
    hd = H // nh
    BS = B * S
    budget = _vmem_budget_bytes()
    pbytes = np.dtype(proba_dtype).itemsize

    x = hidden_states.astype(jnp.bfloat16).reshape(BS, H)
    wq = params["wq"].astype(jnp.bfloat16)                 # (H, H), y = x @ W
    wk = params["wk"].astype(jnp.bfloat16)
    wv = params["wv"].astype(jnp.bfloat16)
    wo = params["wo_t"].astype(jnp.bfloat16)               # (H, H) = Wo.T
    bo = params["bo"].astype(jnp.float32).reshape(1, H)

    # ----- 1) QKV projection over flattened (B*S) rows -----
    tm = _choose_row_tile(BS, H, 3 * H, budget)
    nr = pl.cdiv(BS, tm)
    row_spec = pl.BlockSpec((tm, H), lambda r: (r, 0))
    qkv_out_shapes = tuple(jax.ShapeDtypeStruct((BS, H), jnp.bfloat16)
                           for _ in range(3))

    if H % _LANE == 0:
        w_qkv = jnp.concatenate([wq, wk, wv], axis=1)       # (H, 3H)
        q_flat, k_flat, v_flat = pl.pallas_call(
            _qkv_fused_kernel,
            out_shape=qkv_out_shapes,
            grid_spec=pltpu.PrefetchScalarGridSpec(
                num_scalar_prefetch=0, grid=(nr,),
                in_specs=[row_spec,
                          pl.BlockSpec((H, 3 * H), lambda r: (0, 0))],
                out_specs=(row_spec, row_spec, row_spec)),
            compiler_params=pltpu.CompilerParams(
                dimension_semantics=("parallel",),
                vmem_limit_bytes=budget),
            cost_estimate=pl.CostEstimate(
                flops=int(6 * BS * H * H), transcendentals=0,
                bytes_accessed=int(BS * H * 2 + 3 * H * H * 2 + 3 * BS * H * 2)),
        )(x, w_qkv)
    else:
        wspec = pl.BlockSpec((H, H), lambda r: (0, 0))
        q_flat, k_flat, v_flat = pl.pallas_call(
            _qkv_split_kernel,
            out_shape=qkv_out_shapes,
            grid_spec=pltpu.PrefetchScalarGridSpec(
                num_scalar_prefetch=0, grid=(nr,),
                in_specs=[row_spec, wspec, wspec, wspec],
                out_specs=(row_spec, row_spec, row_spec)),
            compiler_params=pltpu.CompilerParams(
                dimension_semantics=("parallel",),
                vmem_limit_bytes=budget),
            cost_estimate=pl.CostEstimate(
                flops=int(6 * BS * H * H), transcendentals=0,
                bytes_accessed=int(BS * H * 2 + 3 * H * H * 2 + 3 * BS * H * 2)),
        )(x, wq, wk, wv)

    # ----- 2) causal attention, q-axis tiled, kv-chunked inside the kernel ---
    tq = _choose_q_tile(S, hd, pbytes, budget, q_tile)
    nq = S // tq
    mask_b1s = attention_mask.astype(jnp.float32).reshape(B, 1, S)

    if hd % _LANE == 0:
        # transpose-free head indexing straight out of the (B, S, H) slabs.
        qa = q_flat.reshape(B, S, H)
        ka = k_flat.reshape(B, S, H)
        va = v_flat.reshape(B, S, H)
        q_spec = pl.BlockSpec((1, tq, hd), lambda b, h, i: (b, i, h))
        kv_spec = pl.BlockSpec((1, S, hd), lambda b, h, i: (b, 0, h))
        ctx_spec = pl.BlockSpec((1, tq, hd), lambda b, h, i: (b, i, h))
        ctx_shape = jax.ShapeDtypeStruct((B, S, H), jnp.bfloat16)
    else:
        # hd too small for lane-aligned head slices: head-split layout (demo).
        def heads(t):
            return t.reshape(B, S, nh, hd).transpose(0, 2, 1, 3)
        qa, ka, va = heads(q_flat), heads(k_flat), heads(v_flat)
        q_spec = pl.BlockSpec((1, 1, tq, hd), lambda b, h, i: (b, h, i, 0))
        kv_spec = pl.BlockSpec((1, 1, S, hd), lambda b, h, i: (b, h, 0, 0))
        ctx_spec = pl.BlockSpec((1, 1, tq, hd), lambda b, h, i: (b, h, i, 0))
        ctx_shape = jax.ShapeDtypeStruct((B, nh, S, hd), jnp.bfloat16)

    ctx_nd, proba = pl.pallas_call(
        _attention_kernel,
        out_shape=(ctx_shape,
                   jax.ShapeDtypeStruct((B, nh, S, S), proba_dtype)),
        grid_spec=pltpu.PrefetchScalarGridSpec(
            num_scalar_prefetch=0, grid=(B, nh, nq),
            in_specs=[q_spec, kv_spec, kv_spec,
                      pl.BlockSpec((1, 1, S), lambda b, h, i: (b, 0, 0))],
            out_specs=(ctx_spec,
                       pl.BlockSpec((1, 1, tq, S), lambda b, h, i: (b, h, i, 0))),
            scratch_shapes=[pltpu.VMEM((tq, 1), jnp.float32),   # running row max
                            pltpu.VMEM((tq, 1), jnp.float32),   # running row sum
                            pltpu.VMEM((tq, hd), jnp.float32),  # P@V accumulator
                            pltpu.VMEM((tq, S), jnp.float32)]), # scores / exps
        compiler_params=pltpu.CompilerParams(
            dimension_semantics=("parallel", "parallel", "parallel"),
            vmem_limit_bytes=budget),
        cost_estimate=pl.CostEstimate(
            flops=int(2 * B * nh * S * (S + tq) * hd),           # causal ~ /2
            transcendentals=int(B * nh * S * (S + tq) // 2),
            bytes_accessed=int(4 * B * S * H * 2
                               + B * nh * S * S * pbytes + B * S * 4)),
    )(qa, ka, va, mask_b1s)

    if hd % _LANE == 0:
        ctx_flat = ctx_nd.reshape(BS, H)
    else:
        ctx_flat = ctx_nd.transpose(0, 2, 1, 3).reshape(BS, H)

    # ----- 3) output projection (single full-width matmul + bias) -----
    tmo = _choose_row_tile(BS, H, H, budget)
    nro = pl.cdiv(BS, tmo)
    row_o = pl.BlockSpec((tmo, H), lambda r: (r, 0))
    out = pl.pallas_call(
        _out_proj_kernel,
        out_shape=jax.ShapeDtypeStruct((BS, H), out_dtype),
        grid_spec=pltpu.PrefetchScalarGridSpec(
            num_scalar_prefetch=0, grid=(nro,),
            in_specs=[row_o,
                      pl.BlockSpec((H, H), lambda r: (0, 0)),
                      pl.BlockSpec((1, H), lambda r: (0, 0))],
            out_specs=row_o),
        compiler_params=pltpu.CompilerParams(
            dimension_semantics=("parallel",),
            vmem_limit_bytes=budget),
        cost_estimate=pl.CostEstimate(
            flops=int(2 * BS * H * H), transcendentals=0,
            bytes_accessed=int(BS * H * 2 + H * H * 2
                               + BS * H * np.dtype(out_dtype).itemsize)),
    )(ctx_flat, wo, bo)

    return out.reshape(B, S, H), proba


# ------------------------------ params / reference ---------------------------

def init_params(key, hidden_size, num_heads):
    """Deterministic init matching the PyTorch module's parameter shapes."""
    k1, k2, k3, k4, k5 = jax.random.split(key, 5)
    scale = 1.0 / jnp.sqrt(jnp.float32(hidden_size))
    # torch nn.Linear layout: weight (out_features, in_features), y = x @ W.T
    Wq = jax.random.uniform(k1, (hidden_size, hidden_size), jnp.float32, -scale, scale)
    Wk = jax.random.uniform(k2, (hidden_size, hidden_size), jnp.float32, -scale, scale)
    Wv = jax.random.uniform(k3, (hidden_size, hidden_size), jnp.float32, -scale, scale)
    Wo = jax.random.uniform(k4, (hidden_size, hidden_size), jnp.float32, -scale, scale)
    bo = jax.random.uniform(k5, (hidden_size,), jnp.float32, -scale, scale)

    params = {
        "num_heads": num_heads,
        "wq": Wq.T, "wk": Wk.T, "wv": Wv.T,   # arranged so y = x @ W
        "wo_t": Wo.T,
        "bo": bo.reshape(1, hidden_size),
    }
    torch_layout = {"Wq": Wq, "Wk": Wk, "Wv": Wv, "Wo": Wo, "bo": bo}
    return params, torch_layout


def reference_forward(x, mask, torch_w, num_heads):
    """Pure-JAX replica of the PyTorch forward (eval mode, additive masking)."""
    B, S, H = x.shape
    hd = H // num_heads

    def proj(W):
        y = x @ W.T
        return y.reshape(B, S, num_heads, hd).transpose(0, 2, 1, 3)

    q, k, v = proj(torch_w["Wq"]), proj(torch_w["Wk"]), proj(torch_w["Wv"])
    score = jnp.einsum("bhqd,bhkd->bhqk", q, k)
    mb = mask.astype(bool)
    ext = (mb[:, None, None, :] & mb[:, None, :, None]
           & jnp.tril(jnp.ones((S, S), bool)))
    lv = jnp.finfo(jnp.float32).min
    score = score + lv * (~ext).astype(jnp.float32)
    proba = jax.nn.softmax(score, axis=-1)
    ctx = jnp.einsum("bhqk,bhkd->bhqd", proba, v)
    ctx = ctx.transpose(0, 2, 1, 3).reshape(B, S, H)
    out = ctx @ torch_w["Wo"].T + torch_w["bo"]
    return out, proba


def _check(out, proba, ref_out, ref_proba, mask, atol, rtol):
    out = out.astype(jnp.float32)
    proba = proba.astype(jnp.float32)
    assert bool(jnp.all(jnp.isfinite(out))) and bool(jnp.all(jnp.isfinite(proba)))
    # Compare on valid (unmasked) query rows only: the kernel intentionally
    # drops the query mask (those rows are meaningless downstream and the
    # reference's additive-finfo.min softmax is overflow-prone there).
    vq = mask.astype(bool)
    vo = vq[:, :, None]
    vp = vq[:, None, :, None]
    assert bool(jnp.allclose(jnp.where(vo, out, 0.0),
                             jnp.where(vo, ref_out, 0.0), atol=atol, rtol=rtol))
    assert bool(jnp.allclose(jnp.where(vp, proba, 0.0),
                             jnp.where(vp, ref_proba, 0.0), atol=atol, rtol=rtol))


if __name__ == "__main__":
    key = jax.random.PRNGKey(0)
    k_x, k_p, k_x2, k_p2 = jax.random.split(key, 4)

    # ---- test 1: module demo shape (hd=8 -> head-split fallback path) ----
    B, S, H, NH = 2, 8, 32, 4
    hidden_states = jax.random.normal(k_x, (B, S, H), jnp.float32)
    attention_mask = jnp.ones((B, S), jnp.int32).at[1, 2].set(0).at[1, -1].set(0)
    params, torch_w = init_params(k_p, H, NH)

    out, proba = auto_regressive_global_self_attention(
        hidden_states, attention_mask, params)
    out = jax.block_until_ready(out)
    proba = jax.block_until_ready(proba)
    assert out.shape == (B, S, H) and proba.shape == (B, NH, S, S)
    ref_out, ref_proba = reference_forward(hidden_states, attention_mask, torch_w, NH)
    _check(out, proba, ref_out, ref_proba, attention_mask, atol=3e-2, rtol=3e-2)

    # ---- test 2: hd=128 -> transpose-free head indexing, fused (H,3H) QKV,
    #              and 2 causal kv-chunks inside the attention kernel ----
    B2, S2, H2, NH2 = 1, 256, 256, 2
    x2 = 0.5 * jax.random.normal(k_x2, (B2, S2, H2), jnp.float32)
    mask2 = jnp.ones((B2, S2), jnp.int32).at[0, 3].set(0).at[0, 200].set(0)
    params2, torch_w2 = init_params(k_p2, H2, NH2)

    out2, proba2 = auto_regressive_global_self_attention(
        x2, mask2, params2, q_tile=128)
    out2 = jax.block_until_ready(out2)
    proba2 = jax.block_until_ready(proba2)
    assert out2.shape == (B2, S2, H2) and proba2.shape == (B2, NH2, S2, S2)
    ref_out2, ref_proba2 = reference_forward(x2, mask2, torch_w2, NH2)
    _check(out2, proba2, ref_out2, ref_proba2, mask2, atol=3e-2, rtol=3e-2)

    print("KERNEL_OK")
</pallas_src>

<mosaic_0001>
module attributes {stable_mosaic.version = 11 : i64} {
  func.func @_qkv_split_kernel(%arg0: i32, %arg1: memref<16x32xbf16, #tpu.memory_space<vmem>>, %arg2: memref<32x32xbf16, #tpu.memory_space<vmem>>, %arg3: memref<32x32xbf16, #tpu.memory_space<vmem>>, %arg4: memref<32x32xbf16, #tpu.memory_space<vmem>>, %arg5: memref<16x32xbf16, #tpu.memory_space<vmem>>, %arg6: memref<16x32xbf16, #tpu.memory_space<vmem>>, %arg7: memref<16x32xbf16, #tpu.memory_space<vmem>>) attributes {dimension_semantics = [#tpu.dimension_semantics<parallel>], iteration_bounds = array<i64: 1>, scalar_prefetch = 0 : i64, scratch_operands = 0 : i64, tpu.core_type = #tpu.core_type<tc>, window_params = [{transform_indices = @transform_0, window_bounds = array<i64: 16, 32>}, {pipeline_mode = #tpu.pipeline_mode<synchronous>, transform_indices = @transform_1, window_bounds = array<i64: 32, 32>}, {pipeline_mode = #tpu.pipeline_mode<synchronous>, transform_indices = @transform_2, window_bounds = array<i64: 32, 32>}, {pipeline_mode = #tpu.pipeline_mode<synchronous>, transform_indices = @transform_3, window_bounds = array<i64: 32, 32>}, {transform_indices = @transform_4, window_bounds = array<i64: 16, 32>}, {transform_indices = @transform_5, window_bounds = array<i64: 16, 32>}, {transform_indices = @transform_6, window_bounds = array<i64: 16, 32>}]} {
    %c0 = arith.constant 0 : index
    %c0_0 = arith.constant 0 : index
    %0 = vector.load %arg1[%c0, %c0_0] : memref<16x32xbf16, #tpu.memory_space<vmem>>, vector<16x32xbf16>
    %c0_1 = arith.constant 0 : index
    %c0_2 = arith.constant 0 : index
    %1 = vector.load %arg2[%c0_1, %c0_2] : memref<32x32xbf16, #tpu.memory_space<vmem>>, vector<32x32xbf16>
    %cst = arith.constant dense<0.000000e+00> : vector<16x32xf32>
    %2 = tpu.matmul %0, %1, %cst {dimension_numbers = #tpu.dot_dimension_numbers<[1], [0], [0], [1], [0, 0, 1, 1], [], []>} : vector<16x32xbf16>, vector<32x32xbf16>, vector<16x32xf32> -> vector<16x32xf32>
    %3 = arith.truncf %2 : vector<16x32xf32> to vector<16x32xbf16>
    %c0_3 = arith.constant 0 : index
    %c0_4 = arith.constant 0 : index
    %4 = vector.load %arg5[%c0_3, %c0_4] : memref<16x32xbf16, #tpu.memory_space<vmem>>, vector<16x32xbf16>
    tpu.vector_store %arg5[%c0_3, %c0_4], %3 {strides = array<i32>} : memref<16x32xbf16, #tpu.memory_space<vmem>>, vector<16x32xbf16>,
    %c0_5 = arith.constant 0 : index
    %c0_6 = arith.constant 0 : index
    %5 = vector.load %arg3[%c0_5, %c0_6] : memref<32x32xbf16, #tpu.memory_space<vmem>>, vector<32x32xbf16>
    %cst_7 = arith.constant dense<0.000000e+00> : vector<16x32xf32>
    %6 = tpu.matmul %0, %5, %cst_7 {dimension_numbers = #tpu.dot_dimension_numbers<[1], [0], [0], [1], [0, 0, 1, 1], [], []>} : vector<16x32xbf16>, vector<32x32xbf16>, vector<16x32xf32> -> vector<16x32xf32>
    %7 = arith.truncf %6 : vector<16x32xf32> to vector<16x32xbf16>
    %c0_8 = arith.constant 0 : index
    %c0_9 = arith.constant 0 : index
    %8 = vector.load %arg6[%c0_8, %c0_9] : memref<16x32xbf16, #tpu.memory_space<vmem>>, vector<16x32xbf16>
    tpu.vector_store %arg6[%c0_8, %c0_9], %7 {strides = array<i32>} : memref<16x32xbf16, #tpu.memory_space<vmem>>, vector<16x32xbf16>,
    %c0_10 = arith.constant 0 : index
    %c0_11 = arith.constant 0 : index
    %9 = vector.load %arg4[%c0_10, %c0_11] : memref<32x32xbf16, #tpu.memory_space<vmem>>, vector<32x32xbf16>
    %cst_12 = arith.constant dense<0.000000e+00> : vector<16x32xf32>
    %10 = tpu.matmul %0, %9, %cst_12 {dimension_numbers = #tpu.dot_dimension_numbers<[1], [0], [0], [1], [0, 0, 1, 1], [], []>} : vector<16x32xbf16>, vector<32x32xbf16>, vector<16x32xf32> -> vector<16x32xf32>
    %11 = arith.truncf %10 : vector<16x32xf32> to vector<16x32xbf16>
    %c0_13 = arith.constant 0 : index
    %c0_14 = arith.constant 0 : index
    %12 = vector.load %arg7[%c0_13, %c0_14] : memref<16x32xbf16, #tpu.memory_space<vmem>>, vector<16x32xbf16>
    tpu.vector_store %arg7[%c0_13, %c0_14], %11 {strides = array<i32>} : memref<16x32xbf16, #tpu.memory_space<vmem>>, vector<16x32xbf16>,
    return
  }
  func.func @transform_0(%arg0: i32) -> (i32, i32) {
    %c0_i32 = arith.constant 0 : i32
    %c0_i32_0 = arith.constant 0 : i32
    return %arg0, %c0_i32 : i32, i32
  }
  func.func @transform_1(%arg0: i32) -> (i32, i32) {
    %c0_i32 = arith.constant 0 : i32
    %c0_i32_0 = arith.constant 0 : i32
    %c0_i32_1 = arith.constant 0 : i32
    return %c0_i32, %c0_i32_0 : i32, i32
  }
  func.func @transform_2(%arg0: i32) -> (i32, i32) {
    %c0_i32 = arith.constant 0 : i32
    %c0_i32_0 = arith.constant 0 : i32
    %c0_i32_1 = arith.constant 0 : i32
    return %c0_i32, %c0_i32_0 : i32, i32
  }
  func.func @transform_3(%arg0: i32) -> (i32, i32) {
    %c0_i32 = arith.constant 0 : i32
    %c0_i32_0 = arith.constant 0 : i32
    %c0_i32_1 = arith.constant 0 : i32
    return %c0_i32, %c0_i32_0 : i32, i32
  }
  func.func @transform_4(%arg0: i32) -> (i32, i32) {
    %c0_i32 = arith.constant 0 : i32
    %c0_i32_0 = arith.constant 0 : i32
    return %arg0, %c0_i32 : i32, i32
  }
  func.func @transform_5(%arg0: i32) -> (i32, i32) {
    %c0_i32 = arith.constant 0 : i32
    %c0_i32_0 = arith.constant 0 : i32
    return %arg0, %c0_i32 : i32, i32
  }
  func.func @transform_6(%arg0: i32) -> (i32, i32) {
    %c0_i32 = arith.constant 0 : i32
    %c0_i32_0 = arith.constant 0 : i32
    return %arg0, %c0_i32 : i32, i32
  }
}

</mosaic_0001>

<llo_original>
// kernel: tpu_custom_call.1
$region0: #{tpu_custom_call.1}
  #allocation0 [shape = 'u32[]', space=smem, size = 0x4, offset = 0x4, fixed_abs, tag = 'smem constant byte address 0x4 - core index']
  #allocation1 [shape = 'u32[144,128]{1,0:T(1,128)}', space=vmem, size = 0x12000, scoped, tag = 'internal scratch']
  %s0 = inlined_call_operand.hbm [shape: bf16[16,32], index: 0, kind: input, shape index: {}]
  %s1 = inlined_call_operand.hbm [shape: bf16[32,32], index: 1, kind: input, shape index: {}]
  %s2 = inlined_call_operand.hbm [shape: bf16[32,32], index: 2, kind: input, shape index: {}]
  %s3 = inlined_call_operand.hbm [shape: bf16[32,32], index: 3, kind: input, shape index: {}]
  %s4 = inlined_call_operand.hbm [shape: bf16[16,32], index: 4, kind: output, shape index: {0}]
  %s5 = inlined_call_operand.hbm [shape: bf16[16,32], index: 5, kind: output, shape index: {1}]
  %s6 = inlined_call_operand.hbm [shape: bf16[16,32], index: 6, kind: output, shape index: {2}]
  %7 = xla_tuple %s4, %s5, %s6
  %s8 = sld [smem:[#allocation0]]
  $region58: #{tpu_custom_call.1} parent=0
    _
  %s10 = ssub.s32 1, %s8
  %s11 = scalar_select 0, %s10, %s8
  $region1: #{tpu_custom_call.1} parent=0
    #allocation2 [shape = 'u8[4096]{0}', space=vmem, size = 0x1000, scoped, tag = 'input window, operand 0, single buffered']
    #allocation3 [shape = 's32[1]{0}', space=sflag, size = 0x4, scoped, tag = 'scoped memory for tpu_custom_call.1']
    #allocation4 [shape = 's32[1]{0}', space=sflag, size = 0x4, scoped, tag = 'scoped memory for tpu_custom_call.1']
    #allocation5 [shape = 'u8[8192]{0}', space=vmem, size = 0x2000, scoped, tag = 'input window, operand 1, single buffered']
    #allocation6 [shape = 's32[1]{0}', space=sflag, size = 0x4, scoped, tag = 'scoped memory for tpu_custom_call.1']
    #allocation7 [shape = 'u8[8192]{0}', space=vmem, size = 0x2000, scoped, tag = 'input window, operand 2, single buffered']
    #allocation8 [shape = 'u8[8192]{0}', space=vmem, size = 0x2000, scoped, tag = 'input window, operand 3, single buffered']
    #allocation9 [shape = 's32[1]{0}', space=sflag, size = 0x4, scoped, tag = 'scoped memory for tpu_custom_call.1']
    #allocation10 [shape = 'u8[4096]{0}', space=vmem, size = 0x1000, scoped, tag = 'output window, operand 0, single buffered']
    #allocation11 [shape = 'u8[4096]{0}', space=vmem, size = 0x1000, scoped, tag = 'output window, operand 1, single buffered']
    #allocation12 [shape = 's32[1]{0}', space=sflag, size = 0x4, scoped, tag = 'scoped memory for tpu_custom_call.1']
    #allocation13 [shape = 'u8[4096]{0}', space=vmem, size = 0x1000, scoped, tag = 'output window, operand 2, single buffered']
    %12 = vsyncpa [#allocation3], 0
    %13 = vsyncpa [#allocation6], 0
    %14 = vsyncpa [#allocation9], 0
    %15 = vsyncpa [#allocation4], 0
    %16 = vsyncpa [#allocation12], 0
    // Predicated region
    $region2: #{tpu_custom_call.1} parent=1 // pred_check
      _
    $region3: #{tpu_custom_call.1} parent=1 // pred_check_branch
      %18 = sbr.rel (0) target = $region5
    $region4: #{tpu_custom_call.1} parent=1 // pred_region
      %s20 = ssub.s32 128, 128
      %21 = vsyncadd [#allocation3], %s20
      %s22 = sshll.u32 [#allocation2], 4
      %s23 = int_to_ptr.vmem [resolvable:$true] %s22
      %28 = dma.hbm_to_vmem [thread:$0]  %s0, 128, %s23, [#allocation3], 64, 64, 4
    $region5: #{tpu_custom_call.1} parent=1 // pred_fallthru
      _
    // Predicated region
    $region6: #{tpu_custom_call.1} parent=1 // pred_check
      _
    $region7: #{tpu_custom_call.1} parent=1 // pred_check_branch
      %30 = sbr.rel (0) target = $region9
    $region8: #{tpu_custom_call.1} parent=1 // pred_region
      %s32 = ssub.s32 256, 256
      %33 = vsyncadd [#allocation6], %s32
      %s34 = sshll.u32 [#allocation5], 4
      %s35 = int_to_ptr.vmem [resolvable:$true] %s34
      %40 = dma.hbm_to_vmem [thread:$0]  %s1, 256, %s35, [#allocation6], 64, 64, 4
    $region9: #{tpu_custom_call.1} parent=1 // pred_fallthru
      _
    // Predicated region
    $region10: #{tpu_custom_call.1} parent=1 // pred_check
      _
    $region11: #{tpu_custom_call.1} parent=1 // pred_check_branch
      %42 = sbr.rel (0) target = $region13
    $region12: #{tpu_custom_call.1} parent=1 // pred_region
      %s44 = ssub.s32 256, 256
      %45 = vsyncadd [#allocation6], %s44
      %s46 = sshll.u32 [#allocation7], 4
      %s47 = int_to_ptr.vmem [resolvable:$true] %s46
      %52 = dma.hbm_to_vmem [thread:$0]  %s2, 256, %s47, [#allocation6], 64, 64, 4
    $region13: #{tpu_custom_call.1} parent=1 // pred_fallthru
      _
    // Predicated region
    $region14: #{tpu_custom_call.1} parent=1 // pred_check
      _
    $region15: #{tpu_custom_call.1} parent=1 // pred_check_branch
      %54 = sbr.rel (0) target = $region17
    $region16: #{tpu_custom_call.1} parent=1 // pred_region
      %s56 = ssub.s32 256, 256
      %57 = vsyncadd [#allocation9], %s56
      %s58 = sshll.u32 [#allocation8], 4
      %s59 = int_to_ptr.vmem [resolvable:$true] %s58
      %64 = dma.hbm_to_vmem [thread:$0]  %s3, 256, %s59, [#allocation9], 64, 64, 4
    $region17: #{tpu_custom_call.1} parent=1 // pred_fallthru
      _
    // Predicated region
    $region18: #{tpu_custom_call.1} parent=1 // pred_check
      _
    $region19: #{tpu_custom_call.1} parent=1 // pred_check_branch
      %66 = sbr.rel (0) target = $region21
    $region20: #{tpu_custom_call.1} parent=1 // pred_region
      %67 = dma.done [#allocation3], 128
    $region21: #{tpu_custom_call.1} parent=1 // pred_fallthru
      _
    // Predicated region
    $region22: #{tpu_custom_call.1} parent=1 // pred_check
      _
    $region23: #{tpu_custom_call.1} parent=1 // pred_check_branch
      %69 = sbr.rel (0) target = $region25
    $region24: #{tpu_custom_call.1} parent=1 // pred_region
      %70 = dma.done [#allocation6], 256
    $region25: #{tpu_custom_call.1} parent=1 // pred_fallthru
      _
    // Predicated region
    $region26: #{tpu_custom_call.1} parent=1 // pred_check
      _
    $region27: #{tpu_custom_call.1} parent=1 // pred_check_branch
      %72 = sbr.rel (0) target = $region29
    $region28: #{tpu_custom_call.1} parent=1 // pred_region
      %73 = dma.done [#allocation6], 256
    $region29: #{tpu_custom_call.1} parent=1 // pred_fallthru
      _
    // Predicated region
    $region30: #{tpu_custom_call.1} parent=1 // pred_check
      _
    $region31: #{tpu_custom_call.1} parent=1 // pred_check_branch
      %75 = sbr.rel (0) target = $region33
    $region32: #{tpu_custom_call.1} parent=1 // pred_region
      %76 = dma.done [#allocation9], 256
    $region33: #{tpu_custom_call.1} parent=1 // pred_fallthru
      _
    %v78 = vld [vmem:[#allocation2] sm:$0xf]
    %v79 = vld [vmem:[#allocation2 + $0x4] sm:$0xf]
    %v80 = vld [vmem:[#allocation5] sm:$0xf]
    %v81 = vld [vmem:[#allocation5 + $0x4] sm:$0xf]
    %v82 = vld [vmem:[#allocation5 + $0x8] sm:$0xf]
    %v83 = vld [vmem:[#allocation5 + $0xc] sm:$0xf]
    %v86 = vunpack.c.l.b16 %v78
    %v87 = vunpack.c.l.b16 %v79
    %v88 = vpack.c.b16 %v87, %v86
    %v93 = vunpack.c.l.b16 %v80
    %v94 = vunpack.c.l.b16 %v81
    %v95 = vunpack.c.l.b16 %v82
    %v96 = vunpack.c.l.b16 %v83
    %v97 = vpack.c.b16 %v94, %v93
    %v98 = vpack.c.b16 %v96, %v95
    %vm101 = vcmask 261120
    %v103 = vsel %vm101, %v88, 0
    %105 = vmatprep.subr.bf16.mxu0 0
    %106 = vmatpush1.bf16.msra.mxu0 0
    %107 = vmatprep.subr.bf16.mxu0 0
    %108 = vmatpush1.bf16.msra.mxu0 0
    %109 = vmatprep.subr.bf16.mxu0 0
    %110 = vmatpush1.bf16.msra.mxu0 0
    %111 = vmatprep.subr.bf16.mxu0 0
    %112 = vmatpush1.bf16.msra.mxu0 0
    %113 = vmatprep.subr.bf16.mxu0 0
    %114 = vmatpush1.bf16.msra.mxu0 0
    %115 = vmatprep.subr.bf16.mxu0 0
    %116 = vmatpush1.bf16.msra.mxu0 0
    %117 = vmatprep.subr.bf16.mxu0 0
    %118 = vmatpush1.bf16.msra.mxu0 %v98
    %119 = vmatprep.subr.bf16.mxu0 0
    %120 = vmatpush1.bf16.msra.mxu0 %v97
    %121 = vmatprep.subr.bf16.mxu0 0
    %122 = vmatpush2.bf16.msra.mxu0 0
    %123 = vmatprep.subr.bf16.mxu0 0
    %124 = vmatpush2.bf16.msra.mxu0 0
    %125 = vmatprep.subr.bf16.mxu0 0
    %126 = vmatpush2.bf16.msra.mxu0 0
    %127 = vmatprep.subr.bf16.mxu0 0
    %128 = vmatpush2.bf16.msra.mxu0 0
    %129 = vmatprep.subr.bf16.mxu0 0
    %130 = vmatpush2.bf16.msra.mxu0 0
    %131 = vmatprep.subr.bf16.mxu0 0
    %132 = vmatpush2.bf16.msra.mxu0 0
    %133 = vmatprep.subr.bf16.mxu0 0
    %134 = vmatpush2.bf16.msra.mxu0 0
    %135 = vmatprep.subr.bf16.mxu0 0
    %136 = vmatpush2.bf16.msra.mxu0 0
    %137 = vmatprep.mubr.bf16.mxu0 0
    %138 = vmatmul.mubr.bf16.gmra.mxu0 %v103
    %v139 = vpop.f32.mrf.mxu0
    %v140 = vadd.f32 0.0, %v139
    %v141 = vpop.f32.mrf.mxu0
    %v142 = vpop.f32.mrf.mxu0
    %v143 = vadd.f32 0.0, %v142
    %v144 = vpop.f32.mrf.mxu0
    %145 = vdwg.mxu0
    %v146 = vpack.c.bf16 %v143, %v140
    %v148 = vunpack.c.l.b16 %v146
    %v149 = vunpack.c.h.b16 %v146
    %v150 = vpack.c.b16 %v148, %v148
    %v151 = vpack.c.b16 %v149, %v149
    %vm154 = vcmask 257024
    %155 = vst.msk [vmem:[#allocation10] sm:$0xf] %vm154, %v150
    %156 = vst.msk [vmem:[#allocation10 + $0x4] sm:$0xf] %vm154, %v151
    %v157 = vld [vmem:[#allocation7] sm:$0xf]
    %v158 = vld [vmem:[#allocation7 + $0x4] sm:$0xf]
    %v159 = vld [vmem:[#allocation7 + $0x8] sm:$0xf]
    %v160 = vld [vmem:[#allocation7 + $0xc] sm:$0xf]
    %v165 = vunpack.c.l.b16 %v157
    %v166 = vunpack.c.l.b16 %v158
    %v167 = vunpack.c.l.b16 %v159
    %v168 = vunpack.c.l.b16 %v160
    %v169 = vpack.c.b16 %v166, %v165
    %v170 = vpack.c.b16 %v168, %v167
    %173 = vmatprep.subr.bf16.mxu0 0
    %174 = vmatpush1.bf16.msra.mxu0 0
    %175 = vmatprep.subr.bf16.mxu0 0
    %176 = vmatpush1.bf16.msra.mxu0 0
    %177 = vmatprep.subr.bf16.mxu0 0
    %178 = vmatpush1.bf16.msra.mxu0 0
    %179 = vmatprep.subr.bf16.mxu0 0
    %180 = vmatpush1.bf16.msra.mxu0 0
    %181 = vmatprep.subr.bf16.mxu0 0
    %182 = vmatpush1.bf16.msra.mxu0 0
    %183 = vmatprep.subr.bf16.mxu0 0
    %184 = vmatpush1.bf16.msra.mxu0 0
    %185 = vmatprep.subr.bf16.mxu0 0
    %186 = vmatpush1.bf16.msra.mxu0 %v170
    %187 = vmatprep.subr.bf16.mxu0 0
    %188 = vmatpush1.bf16.msra.mxu0 %v169
    %189 = vmatprep.subr.bf16.mxu0 0
    %190 = vmatpush2.bf16.msra.mxu0 0
    %191 = vmatprep.subr.bf16.mxu0 0
    %192 = vmatpush2.bf16.msra.mxu0 0
    %193 = vmatprep.subr.bf16.mxu0 0
    %194 = vmatpush2.bf16.msra.mxu0 0
    %195 = vmatprep.subr.bf16.mxu0 0
    %196 = vmatpush2.bf16.msra.mxu0 0
    %197 = vmatprep.subr.bf16.mxu0 0
    %198 = vmatpush2.bf16.msra.mxu0 0
    %199 = vmatprep.subr.bf16.mxu0 0
    %200 = vmatpush2.bf16.msra.mxu0 0
    %201 = vmatprep.subr.bf16.mxu0 0
    %202 = vmatpush2.bf16.msra.mxu0 0
    %203 = vmatprep.subr.bf16.mxu0 0
    %204 = vmatpush2.bf16.msra.mxu0 0
    %205 = vmatprep.mubr.bf16.mxu0 0
    %206 = vmatmul.mubr.bf16.gmra.mxu0 %v103
    %v207 = vpop.f32.mrf.mxu0
    %v208 = vadd.f32 0.0, %v207
    %v209 = vpop.f32.mrf.mxu0
    %v210 = vpop.f32.mrf.mxu0
    %v211 = vadd.f32 0.0, %v210
    %v212 = vpop.f32.mrf.mxu0
    %213 = vdwg.mxu0
    %v214 = vpack.c.bf16 %v211, %v208
    %v216 = vunpack.c.l.b16 %v214
    %v217 = vunpack.c.h.b16 %v214
    %v218 = vpack.c.b16 %v216, %v216
    %v219 = vpack.c.b16 %v217, %v217
    %222 = vst.msk [vmem:[#allocation11] sm:$0xf] %vm154, %v218
    %223 = vst.msk [vmem:[#allocation11 + $0x4] sm:$0xf] %vm154, %v219
    %v224 = vld [vmem:[#allocation8] sm:$0xf]
    %v225 = vld [vmem:[#allocation8 + $0x4] sm:$0xf]
    %v226 = vld [vmem:[#allocation8 + $0x8] sm:$0xf]
    %v227 = vld [vmem:[#allocation8 + $0xc] sm:$0xf]
    %v232 = vunpack.c.l.b16 %v224
    %v233 = vunpack.c.l.b16 %v225
    %v234 = vunpack.c.l.b16 %v226
    %v235 = vunpack.c.l.b16 %v227
    %v236 = vpack.c.b16 %v233, %v232
    %v237 = vpack.c.b16 %v235, %v234
    %240 = vmatprep.subr.bf16.mxu0 0
    %241 = vmatpush1.bf16.msra.mxu0 0
    %242 = vmatprep.subr.bf16.mxu0 0
    %243 = vmatpush1.bf16.msra.mxu0 0
    %244 = vmatprep.subr.bf16.mxu0 0
    %245 = vmatpush1.bf16.msra.mxu0 0
    %246 = vmatprep.subr.bf16.mxu0 0
    %247 = vmatpush1.bf16.msra.mxu0 0
    %248 = vmatprep.subr.bf16.mxu0 0
    %249 = vmatpush1.bf16.msra.mxu0 0
    %250 = vmatprep.subr.bf16.mxu0 0
    %251 = vmatpush1.bf16.msra.mxu0 0
    %252 = vmatprep.subr.bf16.mxu0 0
    %253 = vmatpush1.bf16.msra.mxu0 %v237
    %254 = vmatprep.subr.bf16.mxu0 0
    %255 = vmatpush1.bf16.msra.mxu0 %v236
    %256 = vmatprep.subr.bf16.mxu0 0
    %257 = vmatpush2.bf16.msra.mxu0 0
    %258 = vmatprep.subr.bf16.mxu0 0
    %259 = vmatpush2.bf16.msra.mxu0 0
    %260 = vmatprep.subr.bf16.mxu0 0
    %261 = vmatpush2.bf16.msra.mxu0 0
    %262 = vmatprep.subr.bf16.mxu0 0
    %263 = vmatpush2.bf16.msra.mxu0 0
    %264 = vmatprep.subr.bf16.mxu0 0
    %265 = vmatpush2.bf16.msra.mxu0 0
    %266 = vmatprep.subr.bf16.mxu0 0
    %267 = vmatpush2.bf16.msra.mxu0 0
    %268 = vmatprep.subr.bf16.mxu0 0
    %269 = vmatpush2.bf16.msra.mxu0 0
    %270 = vmatprep.subr.bf16.mxu0 0
    %271 = vmatpush2.bf16.msra.mxu0 0
    %272 = vmatprep.mubr.bf16.mxu0 0
    %273 = vmatmul.mubr.bf16.gmra.mxu0 %v103
    %v274 = vpop.f32.mrf.mxu0
    %v275 = vadd.f32 0.0, %v274
    %v276 = vpop.f32.mrf.mxu0
    %v277 = vpop.f32.mrf.mxu0
    %v278 = vadd.f32 0.0, %v277
    %v279 = vpop.f32.mrf.mxu0
    %280 = vdwg.mxu0
    %v281 = vpack.c.bf16 %v278, %v275
    %v283 = vunpack.c.l.b16 %v281
    %v284 = vunpack.c.h.b16 %v281
    %v285 = vpack.c.b16 %v283, %v283
    %v286 = vpack.c.b16 %v284, %v284
    %289 = vst.msk [vmem:[#allocation13] sm:$0xf] %vm154, %v285
    %290 = vst.msk [vmem:[#allocation13 + $0x4] sm:$0xf] %vm154, %v286
    // Predicated region
    $region34: #{tpu_custom_call.1} parent=1 // pred_check
      _
    $region35: #{tpu_custom_call.1} parent=1 // pred_check_branch
      %292 = sbr.rel (0) target = $region37
    $region36: #{tpu_custom_call.1} parent=1 // pred_region
      %s294 = ssub.s32 128, 128
      %295 = vsyncadd [#allocation4], %s294
      %s296 = sshll.u32 [#allocation10], 4
      %s297 = int_to_ptr.vmem [resolvable:$true] %s296
      %302 = dma.vmem_to_hbm [thread:$0]  %s297, 128, %s4, [#allocation4], 64, 64, 4
    $region37: #{tpu_custom_call.1} parent=1 // pred_fallthru
      _
    // Predicated region
    $region38: #{tpu_custom_call.1} parent=1 // pred_check
      _
    $region39: #{tpu_custom_call.1} parent=1 // pred_check_branch
      %304 = sbr.rel (0) target = $region41
    $region40: #{tpu_custom_call.1} parent=1 // pred_region
      %s306 = ssub.s32 128, 128
      %307 = vsyncadd [#allocation12], %s306
      %s308 = sshll.u32 [#allocation11], 4
      %s309 = int_to_ptr.vmem [resolvable:$true] %s308
      %314 = dma.vmem_to_hbm [thread:$0]  %s309, 128, %s5, [#allocation12], 64, 64, 4
    $region41: #{tpu_custom_call.1} parent=1 // pred_fallthru
      _
    // Predicated region
    $region42: #{tpu_custom_call.1} parent=1 // pred_check
      _
    $region43: #{tpu_custom_call.1} parent=1 // pred_check_branch
      %316 = sbr.rel (0) target = $region45
    $region44: #{tpu_custom_call.1} parent=1 // pred_region
      %s318 = ssub.s32 128, 128
      %319 = vsyncadd [#allocation12], %s318
      %s320 = sshll.u32 [#allocation13], 4
      %s321 = int_to_ptr.vmem [resolvable:$true] %s320
      %326 = dma.vmem_to_hbm [thread:$0]  %s321, 128, %s6, [#allocation12], 64, 64, 4
    $region45: #{tpu_custom_call.1} parent=1 // pred_fallthru
      _
    // Predicated region
    $region46: #{tpu_custom_call.1} parent=1 // pred_check
      _
    $region47: #{tpu_custom_call.1} parent=1 // pred_check_branch
      %328 = sbr.rel (0) target = $region49
    $region48: #{tpu_custom_call.1} parent=1 // pred_region
      %329 = dma.done [#allocation4], 128
    $region49: #{tpu_custom_call.1} parent=1 // pred_fallthru
      _
    // Predicated region
    $region50: #{tpu_custom_call.1} parent=1 // pred_check
      _
    $region51: #{tpu_custom_call.1} parent=1 // pred_check_branch
      %331 = sbr.rel (0) target = $region53
    $region52: #{tpu_custom_call.1} parent=1 // pred_region
      %332 = dma.done [#allocation12], 128
    $region53: #{tpu_custom_call.1} parent=1 // pred_fallthru
      _
    // Predicated region
    $region54: #{tpu_custom_call.1} parent=1 // pred_check
      _
    $region55: #{tpu_custom_call.1} parent=1 // pred_check_branch
      %334 = sbr.rel (0) target = $region57
    $region56: #{tpu_custom_call.1} parent=1 // pred_region
      %335 = dma.done [#allocation12], 128
    $region57: #{tpu_custom_call.1} parent=1 // pred_fallthru
      _
    %336 = vsyncpa [#allocation3], 1
    %337 = vsyncpa [#allocation6], 1
    %338 = vsyncpa [#allocation9], 1
    %339 = vsyncpa [#allocation4], 1
    %340 = vsyncpa [#allocation12], 1

</llo_original>
